<compile_context>
chip_gen: v7x
topology: tpu7x:2x2x1
jax: 0.10.0
libtpu: 0.0.40
codegen_flags: <defaults>
</compile_context>

<pallas_src>
import functools

import jax
import jax.numpy as jnp
from jax.experimental import pallas as pl
from jax.experimental.pallas import tpu as pltpu


def _attention_kernel(num_feats,
                      hpb_ref,      # [F, M]   (h@Wh + bh + bf_i) for this batch row
                      wf_ref,       # [F, H, M]
                      w2_ref,       # [1, M]   w2 as a lane row
                      wm_ref,       # [H, H]
                      bm_ref,       # [1, H]
                      *rest):       # F feat refs [TILE_S, H], then out_ref, alpha_ref
    feat_refs = rest[:num_feats]
    out_ref = rest[num_feats]
    alpha_ref = rest[num_feats + 1]

    hpb = hpb_ref[...]            # [F, M]
    w2 = w2_ref[...]              # [1, M]  (hoisted; reused by every feat)
    wm = wm_ref[...]              # [H, H]
    bm = bm_ref[...]              # [1, H]

    feats = [f[...] for f in feat_refs]          # each [TILE_S, H]

    # Per-feat attention scores: MXU for the [T,H]@[H,M] projection, then a VPU
    # multiply by the broadcast w2 row + lane reduce (instead of a 1-wide matmul).
    scores = []
    for i in range(num_feats):
        fp = jnp.dot(feats[i], wf_ref[i], preferred_element_type=jnp.float32)  # [T, M]
        a = jnp.tanh(fp + hpb[i:i + 1, :])                                     # [T, M]
        scores.append(jnp.sum(a * w2, axis=-1, keepdims=True))                 # [T, 1]

    # Softmax over the feats axis, element-wise across the F score vectors.
    m = scores[0]
    for s in scores[1:]:
        m = jnp.maximum(m, s)
    exps = [jnp.exp(s - m) for s in scores]
    denom = exps[0]
    for e in exps[1:]:
        denom = denom + e
    inv = pl.reciprocal(denom, approx=False)      # exact; matches reference softmax
    alphas = [e * inv for e in exps]              # each [T, 1]

    # context = sum_i alpha_i * feats_i  (no column extraction from a narrow tile)
    ctx = alphas[0] * feats[0]
    for i in range(1, num_feats):
        ctx = ctx + alphas[i] * feats[i]

    # mlp: Dropout (identity in eval) -> Linear -> Tanh
    out_ref[...] = jnp.tanh(
        jnp.dot(ctx, wm, preferred_element_type=jnp.float32) + bm)             # [T, H]

    # alpha in the module's natural [T, F] layout (tiny vs the feat/out streams).
    alpha_ref[...] = jnp.concatenate(alphas, axis=-1)                          # [T, F]


def _choose_tile_s(S, H, M, F, budget_bytes=12 * 1024 * 1024):
    """Largest seq tile (multiple of 8 dividing S, or S itself) within a VMEM budget.

    Budget covers the per-step working set (F feat tiles + out tile + fp scratch +
    alpha); double-buffering + weights still leave headroom inside v7x's 64 MiB.
    """
    per_row_bytes = 4 * ((F + 1) * H + F * M + F)
    cands = [t for t in range(8, min(S, 2048) + 1, 8) if S % t == 0]
    if S <= 2048 and S not in cands:
        cands.append(S)          # small / non-multiple-of-8 S: full-extent block
    if not cands:
        cands = [S]
    for t in sorted(set(cands), reverse=True):
        if t * per_row_bytes <= budget_bytes:
            return t
    return min(cands)


def attention_forward(hidden, feats_list, params):
    """hidden: [B, H], feats_list: list of [B, S, H]. Returns ([B,S,H], [B,S,F])."""
    B, H = hidden.shape
    S = feats_list[0].shape[1]
    F = len(feats_list)
    M = params["wh"].shape[1]

    # Hidden projection once per batch row (removes the S-fold redundant [N, H]
    # HBM stream + matmul), with the per-feat score bias folded in.
    hp = hidden @ params["wh"] + params["bh"]                 # [B, M]
    hpb = hp[:, None, :] + params["bf"][None, :, :]           # [B, F, M]
    w2r = params["w2"].reshape(1, M)                          # [1, M] lane row

    TILE_S = _choose_tile_s(S, H, M, F)
    grid = (B, S // TILE_S)

    # Explicit VMEM budget for the chosen tiles (double-buffered tiles + weights).
    est = 4 * 2 * ((F + 1) * TILE_S * H + TILE_S * F + F * TILE_S * M
                   + F * H * M + H * H + F * M + M + H)
    vmem_limit = int(min(max(2 * est, 16 * 1024 * 1024), 48 * 1024 * 1024))

    feat_spec = pl.BlockSpec((None, TILE_S, H), lambda b, s: (b, s, 0))
    in_specs = [
        pl.BlockSpec((None, F, M), lambda b, s: (b, 0, 0)),   # hpb  (per-batch row)
        pl.BlockSpec((F, H, M), lambda b, s: (0, 0, 0)),      # wf   (resident)
        pl.BlockSpec((1, M), lambda b, s: (0, 0)),            # w2 row
        pl.BlockSpec((H, H), lambda b, s: (0, 0)),            # wm
        pl.BlockSpec((1, H), lambda b, s: (0, 0)),            # bm
    ] + [feat_spec] * F
    out_specs = (
        pl.BlockSpec((None, TILE_S, H), lambda b, s: (b, s, 0)),   # out
        pl.BlockSpec((None, TILE_S, F), lambda b, s: (b, s, 0)),   # alpha
    )

    kernel = functools.partial(_attention_kernel, F)
    out, alpha = pl.pallas_call(
        kernel,
        out_shape=(
            jax.ShapeDtypeStruct((B, S, H), jnp.float32),
            jax.ShapeDtypeStruct((B, S, F), jnp.float32),
        ),
        grid=grid,
        in_specs=in_specs,
        out_specs=out_specs,
        compiler_params=pltpu.CompilerParams(
            dimension_semantics=("parallel", "parallel"),
            vmem_limit_bytes=vmem_limit,
        ),
    )(hpb, params["wf"], w2r, params["wm"], params["bm"], *feats_list)

    return out, alpha


def init_params(key, dim_hidden, dim_feats, dim_mid):
    """Deterministic init mimicking the module's shapes (xavier-normal weights)."""
    F = len(dim_feats)
    ks = jax.random.split(key, 8)

    def xavier(k, fan_in, fan_out, shape):
        std = (2.0 / (fan_in + fan_out)) ** 0.5
        return (std * jax.random.normal(k, shape)).astype(jnp.float32)

    # stored pre-transposed as [in, out]
    wh = xavier(ks[0], dim_hidden, dim_mid, (dim_hidden, dim_mid))
    bh = (0.01 * jax.random.normal(ks[1], (1, dim_mid))).astype(jnp.float32)
    wf = jnp.stack([xavier(jax.random.fold_in(ks[2], i), dim_feats[i], dim_mid,
                           (dim_feats[i], dim_mid)) for i in range(F)], axis=0)
    bf = (0.01 * jax.random.normal(ks[3], (F, dim_mid))).astype(jnp.float32)
    w2 = xavier(ks[4], dim_mid, 1, (dim_mid, 1))
    wm = xavier(ks[5], dim_hidden, dim_hidden, (dim_hidden, dim_hidden))
    bm = (0.01 * jax.random.normal(ks[6], (1, dim_hidden))).astype(jnp.float32)
    return {"wh": wh, "bh": bh, "wf": wf, "bf": bf, "w2": w2, "wm": wm, "bm": bm}


def reference_forward(hidden, feats_list, params):
    """Pure-JAX reference of the PyTorch forward (eval mode)."""
    B, H = hidden.shape
    S = feats_list[0].shape[1]
    Fn = len(feats_list)
    hrep = jnp.broadcast_to(hidden[:, None, :], (B, S, H))
    hp = hrep @ params["wh"] + params["bh"][0]
    scores = []
    for i in range(Fn):
        fp = feats_list[i] @ params["wf"][i] + params["bf"][i]
        scores.append((jnp.tanh(hp + fp) @ params["w2"])[..., 0])
    s = jnp.stack(scores, axis=-1)                       # [B, S, F]
    alpha = jax.nn.softmax(s, axis=-1)
    stacked = jnp.stack(feats_list, axis=2)              # [B, S, F, H]
    ctx = jnp.einsum("bsf,bsfh->bsh", alpha, stacked)
    out = jnp.tanh(ctx @ params["wm"] + params["bm"][0])
    return out, alpha


if __name__ == "__main__":
    B, S, H, M = 2, 8, 32, 32
    dim_feats = [H, H]          # bmm in forward requires dim_feats[i] == dim_hidden
    Fn = len(dim_feats)

    key = jax.random.PRNGKey(0)
    k_p, k_h, k_f0, k_f1 = jax.random.split(key, 4)
    params = init_params(k_p, H, dim_feats, M)

    hidden = jax.random.normal(k_h, (B, H), dtype=jnp.float32)
    feats_list = [jax.random.normal(k_f0, (B, S, H), dtype=jnp.float32),
                  jax.random.normal(k_f1, (B, S, H), dtype=jnp.float32)]

    out, alpha = attention_forward(hidden, feats_list, params)
    out = jax.block_until_ready(out)
    alpha = jax.block_until_ready(alpha)

    ref_out, ref_alpha = reference_forward(hidden, feats_list, params)
    assert out.shape == (B, S, H) and alpha.shape == (B, S, Fn)
    assert jnp.allclose(out, ref_out, atol=1e-5, rtol=1e-5)
    assert jnp.allclose(alpha, ref_alpha, atol=1e-5, rtol=1e-5)

    print("KERNEL_OK")
</pallas_src>

<mosaic_0001>
module attributes {stable_mosaic.version = 11 : i64} {
  func.func @_attention_kernel(%arg0: i32, %arg1: i32, %arg2: memref<1x2x32xf32, #tpu.memory_space<vmem>>, %arg3: memref<2x32x32xf32, #tpu.memory_space<vmem>>, %arg4: memref<1x32xf32, #tpu.memory_space<vmem>>, %arg5: memref<32x32xf32, #tpu.memory_space<vmem>>, %arg6: memref<1x32xf32, #tpu.memory_space<vmem>>, %arg7: memref<1x8x32xf32, #tpu.memory_space<vmem>>, %arg8: memref<1x8x32xf32, #tpu.memory_space<vmem>>, %arg9: memref<1x8x32xf32, #tpu.memory_space<vmem>>, %arg10: memref<1x8x2xf32, #tpu.memory_space<vmem>>) attributes {dimension_semantics = [#tpu.dimension_semantics<parallel>, #tpu.dimension_semantics<parallel>], iteration_bounds = array<i64: 2, 1>, scalar_prefetch = 0 : i64, scratch_operands = 0 : i64, tpu.core_type = #tpu.core_type<tc>, window_params = [{transform_indices = @transform_0, window_bounds = array<i64: 1, 2, 32>}, {pipeline_mode = #tpu.pipeline_mode<synchronous>, transform_indices = @transform_1, window_bounds = array<i64: 2, 32, 32>}, {pipeline_mode = #tpu.pipeline_mode<synchronous>, transform_indices = @transform_2, window_bounds = array<i64: 1, 32>}, {pipeline_mode = #tpu.pipeline_mode<synchronous>, transform_indices = @transform_3, window_bounds = array<i64: 32, 32>}, {pipeline_mode = #tpu.pipeline_mode<synchronous>, transform_indices = @transform_4, window_bounds = array<i64: 1, 32>}, {transform_indices = @transform_5, window_bounds = array<i64: 1, 8, 32>}, {transform_indices = @transform_6, window_bounds = array<i64: 1, 8, 32>}, {transform_indices = @transform_7, window_bounds = array<i64: 1, 8, 32>}, {transform_indices = @transform_8, window_bounds = array<i64: 1, 8, 2>}]} {
    %c0 = arith.constant 0 : index
    %c0_0 = arith.constant 0 : index
    %c0_1 = arith.constant 0 : index
    %0 = vector.load %arg2[%c0, %c0_0, %c0_1] : memref<1x2x32xf32, #tpu.memory_space<vmem>>, vector<1x2x32xf32>
    %1 = vector.shape_cast %0 : vector<1x2x32xf32> to vector<2x32xf32>
    %c0_2 = arith.constant 0 : index
    %c0_3 = arith.constant 0 : index
    %2 = vector.load %arg4[%c0_2, %c0_3] : memref<1x32xf32, #tpu.memory_space<vmem>>, vector<1x32xf32>
    %c0_4 = arith.constant 0 : index
    %c0_5 = arith.constant 0 : index
    %3 = vector.load %arg5[%c0_4, %c0_5] : memref<32x32xf32, #tpu.memory_space<vmem>>, vector<32x32xf32>
    %c0_6 = arith.constant 0 : index
    %c0_7 = arith.constant 0 : index
    %4 = vector.load %arg6[%c0_6, %c0_7] : memref<1x32xf32, #tpu.memory_space<vmem>>, vector<1x32xf32>
    %c0_8 = arith.constant 0 : index
    %c0_9 = arith.constant 0 : index
    %c0_10 = arith.constant 0 : index
    %5 = vector.load %arg7[%c0_8, %c0_9, %c0_10] : memref<1x8x32xf32, #tpu.memory_space<vmem>>, vector<1x8x32xf32>
    %6 = vector.shape_cast %5 : vector<1x8x32xf32> to vector<8x32xf32>
    %c0_11 = arith.constant 0 : index
    %c0_12 = arith.constant 0 : index
    %c0_13 = arith.constant 0 : index
    %7 = vector.load %arg8[%c0_11, %c0_12, %c0_13] : memref<1x8x32xf32, #tpu.memory_space<vmem>>, vector<1x8x32xf32>
    %8 = vector.shape_cast %7 : vector<1x8x32xf32> to vector<8x32xf32>
    %c0_14 = arith.constant 0 : index
    %c0_15 = arith.constant 0 : index
    %c0_16 = arith.constant 0 : index
    %9 = vector.load %arg3[%c0_14, %c0_15, %c0_16] : memref<2x32x32xf32, #tpu.memory_space<vmem>>, vector<1x32x32xf32>
    %10 = vector.shape_cast %9 : vector<1x32x32xf32> to vector<32x32xf32>
    %cst = arith.constant dense<0.000000e+00> : vector<8x32xf32>
    %11 = tpu.matmul %6, %10, %cst {dimension_numbers = #tpu.dot_dimension_numbers<[1], [0], [0], [1], [0, 0, 1, 1], [], []>} : vector<8x32xf32>, vector<32x32xf32>, vector<8x32xf32> -> vector<8x32xf32>
    %12 = vector.extract_strided_slice %1 {offsets = [0, 0], sizes = [1, 32], strides = [1, 1]} : vector<2x32xf32> to vector<1x32xf32>
    %13 = vector.broadcast %12 : vector<1x32xf32> to vector<8x32xf32>
    %14 = arith.addf %11, %13 : vector<8x32xf32>
    %15 = math.tanh %14 : vector<8x32xf32>
    %16 = vector.broadcast %2 : vector<1x32xf32> to vector<8x32xf32>
    %17 = arith.mulf %15, %16 : vector<8x32xf32>
    %cst_17 = arith.constant dense<0.000000e+00> : vector<8xf32>
    %18 = vector.multi_reduction <add>, %17, %cst_17 [1] : vector<8x32xf32> to vector<8xf32>
    %19 = vector.shape_cast %18 : vector<8xf32> to vector<8x1xf32>
    %c1 = arith.constant 1 : index
    %c0_18 = arith.constant 0 : index
    %c0_19 = arith.constant 0 : index
    %20 = vector.load %arg3[%c1, %c0_18, %c0_19] : memref<2x32x32xf32, #tpu.memory_space<vmem>>, vector<1x32x32xf32>
    %21 = vector.shape_cast %20 : vector<1x32x32xf32> to vector<32x32xf32>
    %cst_20 = arith.constant dense<0.000000e+00> : vector<8x32xf32>
    %22 = tpu.matmul %8, %21, %cst_20 {dimension_numbers = #tpu.dot_dimension_numbers<[1], [0], [0], [1], [0, 0, 1, 1], [], []>} : vector<8x32xf32>, vector<32x32xf32>, vector<8x32xf32> -> vector<8x32xf32>
    %23 = vector.extract_strided_slice %1 {offsets = [1, 0], sizes = [1, 32], strides = [1, 1]} : vector<2x32xf32> to vector<1x32xf32>
    %24 = vector.broadcast %23 : vector<1x32xf32> to vector<8x32xf32>
    %25 = arith.addf %22, %24 : vector<8x32xf32>
    %26 = math.tanh %25 : vector<8x32xf32>
    %27 = vector.broadcast %2 : vector<1x32xf32> to vector<8x32xf32>
    %28 = arith.mulf %26, %27 : vector<8x32xf32>
    %cst_21 = arith.constant dense<0.000000e+00> : vector<8xf32>
    %29 = vector.multi_reduction <add>, %28, %cst_21 [1] : vector<8x32xf32> to vector<8xf32>
    %30 = vector.shape_cast %29 : vector<8xf32> to vector<8x1xf32>
    %31 = arith.maximumf %19, %30 : vector<8x1xf32>
    %32 = arith.subf %19, %31 : vector<8x1xf32>
    %33 = math.exp %32 : vector<8x1xf32>
    %34 = arith.subf %30, %31 : vector<8x1xf32>
    %35 = math.exp %34 : vector<8x1xf32>
    %36 = arith.addf %33, %35 : vector<8x1xf32>
    %37 = tpu.reciprocal %36 : vector<8x1xf32> -> vector<8x1xf32>
    %38 = arith.mulf %33, %37 : vector<8x1xf32>
    %39 = arith.mulf %35, %37 : vector<8x1xf32>
    %40 = vector.broadcast %38 : vector<8x1xf32> to vector<8x32xf32>
    %41 = arith.mulf %40, %6 : vector<8x32xf32>
    %42 = vector.broadcast %39 : vector<8x1xf32> to vector<8x32xf32>
    %43 = arith.mulf %42, %8 : vector<8x32xf32>
    %44 = arith.addf %41, %43 : vector<8x32xf32>
    %cst_22 = arith.constant dense<0.000000e+00> : vector<8x32xf32>
    %45 = tpu.matmul %44, %3, %cst_22 {dimension_numbers = #tpu.dot_dimension_numbers<[1], [0], [0], [1], [0, 0, 1, 1], [], []>} : vector<8x32xf32>, vector<32x32xf32>, vector<8x32xf32> -> vector<8x32xf32>
    %46 = vector.broadcast %4 : vector<1x32xf32> to vector<8x32xf32>
    %47 = arith.addf %45, %46 : vector<8x32xf32>
    %48 = math.tanh %47 : vector<8x32xf32>
    %c0_23 = arith.constant 0 : index
    %c0_24 = arith.constant 0 : index
    %c0_25 = arith.constant 0 : index
    %49 = vector.load %arg9[%c0_23, %c0_24, %c0_25] : memref<1x8x32xf32, #tpu.memory_space<vmem>>, vector<1x8x32xf32>
    %50 = vector.shape_cast %49 : vector<1x8x32xf32> to vector<8x32xf32>
    %51 = vector.shape_cast %48 : vector<8x32xf32> to vector<1x8x32xf32>
    tpu.vector_store %arg9[%c0_23, %c0_24, %c0_25], %51 {strides = array<i32>} : memref<1x8x32xf32, #tpu.memory_space<vmem>>, vector<1x8x32xf32>,
    %52 = tpu.concatenate %38, %39 in 1 : vector<8x1xf32>, vector<8x1xf32> -> vector<8x2xf32>
    %c0_26 = arith.constant 0 : index
    %c0_27 = arith.constant 0 : index
    %c0_28 = arith.constant 0 : index
    %53 = vector.load %arg10[%c0_26, %c0_27, %c0_28] : memref<1x8x2xf32, #tpu.memory_space<vmem>>, vector<1x8x2xf32>
    %54 = vector.shape_cast %53 : vector<1x8x2xf32> to vector<8x2xf32>
    %55 = vector.shape_cast %52 : vector<8x2xf32> to vector<1x8x2xf32>
    tpu.vector_store %arg10[%c0_26, %c0_27, %c0_28], %55 {strides = array<i32>} : memref<1x8x2xf32, #tpu.memory_space<vmem>>, vector<1x8x2xf32>,
    return
  }
  func.func @transform_0(%arg0: i32, %arg1: i32) -> (i32, i32, i32) {
    %c0_i32 = arith.constant 0 : i32
    %c0_i32_0 = arith.constant 0 : i32
    %c0_i32_1 = arith.constant 0 : i32
    return %arg0, %c0_i32, %c0_i32_0 : i32, i32, i32
  }
  func.func @transform_1(%arg0: i32, %arg1: i32) -> (i32, i32, i32) {
    %c0_i32 = arith.constant 0 : i32
    %c0_i32_0 = arith.constant 0 : i32
    %c0_i32_1 = arith.constant 0 : i32
    %c0_i32_2 = arith.constant 0 : i32
    return %c0_i32, %c0_i32_0, %c0_i32_1 : i32, i32, i32
  }
  func.func @transform_2(%arg0: i32, %arg1: i32) -> (i32, i32) {
    %c0_i32 = arith.constant 0 : i32
    %c0_i32_0 = arith.constant 0 : i32
    %c0_i32_1 = arith.constant 0 : i32
    return %c0_i32, %c0_i32_0 : i32, i32
  }
  func.func @transform_3(%arg0: i32, %arg1: i32) -> (i32, i32) {
    %c0_i32 = arith.constant 0 : i32
    %c0_i32_0 = arith.constant 0 : i32
    %c0_i32_1 = arith.constant 0 : i32
    return %c0_i32, %c0_i32_0 : i32, i32
  }
  func.func @transform_4(%arg0: i32, %arg1: i32) -> (i32, i32) {
    %c0_i32 = arith.constant 0 : i32
    %c0_i32_0 = arith.constant 0 : i32
    %c0_i32_1 = arith.constant 0 : i32
    return %c0_i32, %c0_i32_0 : i32, i32
  }
  func.func @transform_5(%arg0: i32, %arg1: i32) -> (i32, i32, i32) {
    %c0_i32 = arith.constant 0 : i32
    %c0_i32_0 = arith.constant 0 : i32
    return %arg0, %arg1, %c0_i32 : i32, i32, i32
  }
  func.func @transform_6(%arg0: i32, %arg1: i32) -> (i32, i32, i32) {
    %c0_i32 = arith.constant 0 : i32
    %c0_i32_0 = arith.constant 0 : i32
    return %arg0, %arg1, %c0_i32 : i32, i32, i32
  }
  func.func @transform_7(%arg0: i32, %arg1: i32) -> (i32, i32, i32) {
    %c0_i32 = arith.constant 0 : i32
    %c0_i32_0 = arith.constant 0 : i32
    return %arg0, %arg1, %c0_i32 : i32, i32, i32
  }
  func.func @transform_8(%arg0: i32, %arg1: i32) -> (i32, i32, i32) {
    %c0_i32 = arith.constant 0 : i32
    %c0_i32_0 = arith.constant 0 : i32
    return %arg0, %arg1, %c0_i32 : i32, i32, i32
  }
}

</mosaic_0001>

<llo_original>
// kernel: tpu_custom_call.1
$region0: #{tpu_custom_call.1}
  #allocation0 [shape = 'u32[]', space=smem, size = 0x4, offset = 0x4, fixed_abs, tag = 'smem constant byte address 0x4 - core index']
  #allocation1 [shape = 'u32[144,128]{1,0:T(1,128)}', space=vmem, size = 0x12000, scoped, tag = 'internal scratch']
  %s0 = inlined_call_operand.hbm [shape: f32[2,2,32], index: 0, kind: input, shape index: {}]
  %s1 = inlined_call_operand.hbm [shape: f32[2,32,32], index: 1, kind: input, shape index: {}]
  %s2 = inlined_call_operand.vmem [shape: f32[1,32], index: 2, kind: input, shape index: {}]
  %s3 = inlined_call_operand.hbm [shape: f32[32,32], index: 3, kind: input, shape index: {}]
  %s4 = inlined_call_operand.vmem [shape: f32[1,32], index: 4, kind: input, shape index: {}]
  %s5 = inlined_call_operand.vmem [shape: f32[2,8,32], index: 5, kind: input, shape index: {}]
  %s6 = inlined_call_operand.hbm [shape: f32[2,8,32], index: 6, kind: input, shape index: {}]
  %s7 = inlined_call_operand.hbm [shape: f32[2,8,32], index: 7, kind: output, shape index: {0}]
  %s8 = inlined_call_operand.vmem [shape: f32[2,8,2], index: 8, kind: output, shape index: {1}]
  %9 = xla_tuple %s7, %s8
  %s10 = sld [smem:[#allocation0]]
  $region85: #{tpu_custom_call.1} parent=0
    _
  %s12 = ssub.s32 1, %s10
  %s13 = scalar_select 0, %s12, %s10
  $region1: #{tpu_custom_call.1} parent=0
    #allocation2 [shape = 'u8[2048]{0}', space=vmem, size = 0x800, scoped, tag = 'input window, operand 0']
    #allocation3 [shape = 's32[2]{0}', space=sflag, size = 0x8, scoped, tag = 'scoped memory for tpu_custom_call.1']
    #allocation4 [shape = 's32[2]{0}', space=sflag, size = 0x8, scoped, tag = 'scoped memory for tpu_custom_call.1']
    #allocation5 [shape = 'u8[32768]{0}', space=vmem, size = 0x8000, scoped, tag = 'input window, operand 1, single buffered']
    #allocation6 [shape = 's32[1]{0}', space=sflag, size = 0x4, scoped, tag = 'scoped memory for tpu_custom_call.1']
    #allocation7 [shape = 'u8[16384]{0}', space=vmem, size = 0x4000, scoped, tag = 'input window, operand 3, single buffered']
    #allocation8 [shape = 'u8[8192]{0}', space=vmem, size = 0x2000, scoped, tag = 'input window, operand 6']
    #allocation9 [shape = 's32[2]{0}', space=sflag, size = 0x8, scoped, tag = 'scoped memory for tpu_custom_call.1']
    #allocation10 [shape = 'u8[8192]{0}', space=vmem, size = 0x2000, scoped, tag = 'output window, operand 0']
    %14 = vsyncpa [#allocation3], 0
    %s15 = scalar_lea.sflag [#allocation3], 1
    %16 = vsyncpa %s15, 0
    %17 = vsyncpa [#allocation6], 0
    %18 = vsyncpa [#allocation9], 0
    %s19 = scalar_lea.sflag [#allocation9], 1
    %20 = vsyncpa %s19, 0
    %21 = vsyncpa [#allocation4], 0
    %s22 = scalar_lea.sflag [#allocation4], 1
    %23 = vsyncpa %s22, 0
    loop: start=0, step=1, limit=4
    $region2: #{tpu_custom_call.1} parent=1 // loop_pre_header
      _
    $region3: #{tpu_custom_call.1} parent=1 // loop_header
      %s25 = sphi 0, %s29
      %p26 = scmp.ge.s32.totalorder %s25, 4
      %s32 = sphi 0, %s44
      %s33 = sphi 0, %s40
      %s34 = sphi 0, %s32
      %s35 = sphi 0, %s33
      %s36 = sphi 0, %s34
      %s37 = sphi 0, %s35
      %s47 = sphi 0, %s49
      %s50 = sphi 0, %s47
      %s51 = sphi 0, %s50
      %s67 = sphi 0, %s51
      %s71 = sphi 0, %s71
      %s73 = sphi 0, %s71
      %s74 = sphi 0, %s73
      %s88 = sphi 0, %s74
      %s92 = sphi 0, %s92
      %s94 = sphi 0, %s92
      %s95 = sphi 0, %s94
      %s109 = sphi 0, %s95
      %s113 = sphi 0, %s113
      %s115 = sphi 0, %s113
      %s116 = sphi 0, %s115
      %s130 = sphi 0, %s116
      %s134 = sphi 0, %s134
      %s136 = sphi 0, %s134
      %s137 = sphi 0, %s136
      %s151 = sphi 0, %s137
      %s159 = sphi 0, %s161
      %s162 = sphi 0, %s159
      %s163 = sphi 0, %s162
      %s179 = sphi 0, %s163
      %s187 = sphi 0, %s189
      %s190 = sphi 0, %s187
      %s191 = sphi 0, %s190
      %s207 = sphi 0, %s191
      %s215 = sphi 0, %s217
      %s218 = sphi 0, %s215
      %s219 = sphi 0, %s218
      %s235 = sphi 0, %s219
      %s243 = sphi 0, %s245
      %s246 = sphi 0, %s243
      %s247 = sphi 0, %s246
      %s263 = sphi 0, %s247
    $region4: #{tpu_custom_call.1} parent=1 // loop_header_branch
      %28 = sbr.rel (%p26) target = $region8
    $region5: #{tpu_custom_call.1} parent=1 // loop_body
      %s30 = ssub.s32 %s25, 1
      %s31 = ssub.s32 %s25, 2
      %s38 = sadd.s32 1, %s33
      %p39 = scmp.ge.s32.totalorder %s38, 1
      %s40 = scalar_select %p39, 0, %s38
      %s41 = sadd.s32 1, %s32
      %s42 = scalar_select %p39, %s41, %s32
      %p43 = scmp.ge.s32.totalorder %s42, 2
      %s44 = scalar_select %p43, 0, %s42
      %s45 = ssub.s32 %s32, %s44
      %p46 = scmp.eq.s32.totalorder %s45, 0
      %s48 = sadd.s32 %s47, 1
      %s49 = scalar_select %p46, %s47, %s48
      %p52 = pneg %p46
      %p53 = scmp.eq.s32.totalorder %s25, 1
      %p54 = por %p52, %p53
      %p55 = scmp.ne.s32.totalorder %s47, %s50
      %p56 = scmp.eq.s32.totalorder %s25, 0
      %p57 = por %p55, %p56
      %p58 = scmp.ne.s32.totalorder %s47, %s50
      %p59 = scmp.eq.s32.totalorder %s30, 1
      %p60 = por %p58, %p59
      %p61 = scmp.ne.s32.totalorder %s50, %s51
      %p62 = scmp.eq.s32.totalorder %s30, 0
      %p63 = por %p61, %p62
      %p64 = scmp.ne.s32.totalorder %s50, %s51
      %p65 = scmp.eq.s32.totalorder %s31, 1
      %p66 = por %p64, %p65
      %p68 = scmp.ne.s32.totalorder %s51, %s67
      %p69 = scmp.eq.s32.totalorder %s31, 0
      %p70 = por %p68, %p69
      %s72 = sadd.s32 %s71, 1
      %p75 = scmp.eq.s32.totalorder %s25, 1
      %p76 = scmp.ne.s32.totalorder %s71, %s73
      %p77 = scmp.eq.s32.totalorder %s25, 0
      %p78 = por %p76, %p77
      %p79 = scmp.ne.s32.totalorder %s71, %s73
      %p80 = scmp.eq.s32.totalorder %s30, 1
      %p81 = por %p79, %p80
      %p82 = scmp.ne.s32.totalorder %s73, %s74
      %p83 = scmp.eq.s32.totalorder %s30, 0
      %p84 = por %p82, %p83
      %p85 = scmp.ne.s32.totalorder %s73, %s74
      %p86 = scmp.eq.s32.totalorder %s31, 1
      %p87 = por %p85, %p86
      %p89 = scmp.ne.s32.totalorder %s74, %s88
      %p90 = scmp.eq.s32.totalorder %s31, 0
      %p91 = por %p89, %p90
      %s93 = sadd.s32 %s92, 1
      %p96 = scmp.eq.s32.totalorder %s25, 1
      %p97 = scmp.ne.s32.totalorder %s92, %s94
      %p98 = scmp.eq.s32.totalorder %s25, 0
      %p99 = por %p97, %p98
      %p100 = scmp.ne.s32.totalorder %s92, %s94
      %p101 = scmp.eq.s32.totalorder %s30, 1
      %p102 = por %p100, %p101
      %p103 = scmp.ne.s32.totalorder %s94, %s95
      %p104 = scmp.eq.s32.totalorder %s30, 0
      %p105 = por %p103, %p104
      %p106 = scmp.ne.s32.totalorder %s94, %s95
      %p107 = scmp.eq.s32.totalorder %s31, 1
      %p108 = por %p106, %p107
      %p110 = scmp.ne.s32.totalorder %s95, %s109
      %p111 = scmp.eq.s32.totalorder %s31, 0
      %p112 = por %p110, %p111
      %s114 = sadd.s32 %s113, 1
      %p117 = scmp.eq.s32.totalorder %s25, 1
      %p118 = scmp.ne.s32.totalorder %s113, %s115
      %p119 = scmp.eq.s32.totalorder %s25, 0
      %p120 = por %p118, %p119
      %p121 = scmp.ne.s32.totalorder %s113, %s115
      %p122 = scmp.eq.s32.totalorder %s30, 1
      %p123 = por %p121, %p122
      %p124 = scmp.ne.s32.totalorder %s115, %s116
      %p125 = scmp.eq.s32.totalorder %s30, 0
      %p126 = por %p124, %p125
      %p127 = scmp.ne.s32.totalorder %s115, %s116
      %p128 = scmp.eq.s32.totalorder %s31, 1
      %p129 = por %p127, %p128
      %p131 = scmp.ne.s32.totalorder %s116, %s130
      %p132 = scmp.eq.s32.totalorder %s31, 0
      %p133 = por %p131, %p132
      %s135 = sadd.s32 %s134, 1
      %p138 = scmp.eq.s32.totalorder %s25, 1
      %p139 = scmp.ne.s32.totalorder %s134, %s136
      %p140 = scmp.eq.s32.totalorder %s25, 0
      %p141 = por %p139, %p140
      %p142 = scmp.ne.s32.totalorder %s134, %s136
      %p143 = scmp.eq.s32.totalorder %s30, 1
      %p144 = por %p142, %p143
      %p145 = scmp.ne.s32.totalorder %s136, %s137
      %p146 = scmp.eq.s32.totalorder %s30, 0
      %p147 = por %p145, %p146
      %p148 = scmp.ne.s32.totalorder %s136, %s137
      %p149 = scmp.eq.s32.totalorder %s31, 1
      %p150 = por %p148, %p149
      %p152 = scmp.ne.s32.totalorder %s137, %s151
      %p153 = scmp.eq.s32.totalorder %s31, 0
      %p154 = por %p152, %p153
      %s155 = ssub.s32 %s32, %s44
      %s156 = ssub.s32 %s33, %s40
      %s157 = sor.u32 %s155, %s156
      %p158 = scmp.eq.s32.totalorder %s157, 0
      %s160 = sadd.s32 %s159, 1
      %s161 = scalar_select %p158, %s159, %s160
      %p164 = pneg %p158
      %p165 = scmp.eq.s32.totalorder %s25, 1
      %p166 = por %p164, %p165
      %p167 = scmp.ne.s32.totalorder %s159, %s162
      %p168 = scmp.eq.s32.totalorder %s25, 0
      %p169 = por %p167, %p168
      %p170 = scmp.ne.s32.totalorder %s159, %s162
      %p171 = scmp.eq.s32.totalorder %s30, 1
      %p172 = por %p170, %p171
      %p173 = scmp.ne.s32.totalorder %s162, %s163
      %p174 = scmp.eq.s32.totalorder %s30, 0
      %p175 = por %p173, %p174
      %p176 = scmp.ne.s32.totalorder %s162, %s163
      %p177 = scmp.eq.s32.totalorder %s31, 1
      %p178 = por %p176, %p177
      %p180 = scmp.ne.s32.totalorder %s163, %s179
      %p181 = scmp.eq.s32.totalorder %s31, 0
      %p182 = por %p180, %p181
      %s183 = ssub.s32 %s32, %s44
      %s184 = ssub.s32 %s33, %s40
      %s185 = sor.u32 %s183, %s184
      %p186 = scmp.eq.s32.totalorder %s185, 0
      %s188 = sadd.s32 %s187, 1
      %s189 = scalar_select %p186, %s187, %s188
      %p192 = pneg %p186
      %p193 = scmp.eq.s32.totalorder %s25, 1
      %p194 = por %p192, %p193
      %p195 = scmp.ne.s32.totalorder %s187, %s190
      %p196 = scmp.eq.s32.totalorder %s25, 0
      %p197 = por %p195, %p196
      %p198 = scmp.ne.s32.totalorder %s187, %s190
      %p199 = scmp.eq.s32.totalorder %s30, 1
      %p200 = por %p198, %p199
      %p201 = scmp.ne.s32.totalorder %s190, %s191
      %p202 = scmp.eq.s32.totalorder %s30, 0
      %p203 = por %p201, %p202
      %p204 = scmp.ne.s32.totalorder %s190, %s191
      %p205 = scmp.eq.s32.totalorder %s31, 1
      %p206 = por %p204, %p205
      %p208 = scmp.ne.s32.totalorder %s191, %s207
      %p209 = scmp.eq.s32.totalorder %s31, 0
      %p210 = por %p208, %p209
      %s211 = ssub.s32 %s32, %s44
      %s212 = ssub.s32 %s33, %s40
      %s213 = sor.u32 %s211, %s212
      %p214 = scmp.eq.s32.totalorder %s213, 0
      %s216 = sadd.s32 %s215, 1
      %s217 = scalar_select %p214, %s215, %s216
      %p220 = pneg %p214
      %p221 = scmp.eq.s32.totalorder %s25, 1
      %p222 = por %p220, %p221
      %p223 = scmp.ne.s32.totalorder %s215, %s218
      %p224 = scmp.eq.s32.totalorder %s25, 0
      %p225 = por %p223, %p224
      %p226 = scmp.ne.s32.totalorder %s215, %s218
      %p227 = scmp.eq.s32.totalorder %s30, 1
      %p228 = por %p226, %p227
      %p229 = scmp.ne.s32.totalorder %s218, %s219
      %p230 = scmp.eq.s32.totalorder %s30, 0
      %p231 = por %p229, %p230
      %p232 = scmp.ne.s32.totalorder %s218, %s219
      %p233 = scmp.eq.s32.totalorder %s31, 1
      %p234 = por %p232, %p233
      %p236 = scmp.ne.s32.totalorder %s219, %s235
      %p237 = scmp.eq.s32.totalorder %s31, 0
      %p238 = por %p236, %p237
      %s239 = ssub.s32 %s32, %s44
      %s240 = ssub.s32 %s33, %s40
      %s241 = sor.u32 %s239, %s240
      %p242 = scmp.eq.s32.totalorder %s241, 0
      %s244 = sadd.s32 %s243, 1
      %s245 = scalar_select %p242, %s243, %s244
      %p248 = pneg %p242
      %p249 = scmp.eq.s32.totalorder %s25, 1
      %p250 = por %p248, %p249
      %p251 = scmp.ne.s32.totalorder %s243, %s246
      %p252 = scmp.eq.s32.totalorder %s25, 0
      %p253 = por %p251, %p252
      %p254 = scmp.ne.s32.totalorder %s243, %s246
      %p255 = scmp.eq.s32.totalorder %s30, 1
      %p256 = por %p254, %p255
      %p257 = scmp.ne.s32.totalorder %s246, %s247
      %p258 = scmp.eq.s32.totalorder %s30, 0
      %p259 = por %p257, %p258
      %p260 = scmp.ne.s32.totalorder %s246, %s247
      %p261 = scmp.eq.s32.totalorder %s31, 1
      %p262 = por %p260, %p261
      %p264 = scmp.ne.s32.totalorder %s247, %s263
      %p265 = scmp.eq.s32.totalorder %s31, 0
      %p266 = por %p264, %p265
      %p267 = scmp.le.s32.totalorder 1, %s25
      %p268 = scmp.lt.s32.totalorder %s25, 3
      %p269 = pnand %p267, %p268
      %p270 = pneg %p269
      // Predicated region
      $region9: #{tpu_custom_call.1} parent=5 // pred_check
        _
      $region10: #{tpu_custom_call.1} parent=5 // pred_check_branch
        %272 = sbr.rel (%p269) target = $region12
      $region11: #{tpu_custom_call.1} parent=5 // pred_region
        %s273 = ssub.s32 %s25, 1
        // Predicated region
        $region13: #{tpu_custom_call.1} parent=11 // pred_check
          %p274 = pneg %p84
        $region14: #{tpu_custom_call.1} parent=11 // pred_check_branch
          %276 = sbr.rel (%p274) target = $region16
        $region15: #{tpu_custom_call.1} parent=11 // pred_region
          %s278 = ssub.s32 1024, 1024
          %279 = vsyncadd [#allocation6], %s278
          %s280 = sshll.u32 [#allocation5], 4
          %s281 = int_to_ptr.vmem [resolvable:$true] %s280
          %286 = dma.hbm_to_vmem [thread:$0]  %s1, 1024, %s281, [#allocation6], 128, 128, 8
        $region16: #{tpu_custom_call.1} parent=11 // pred_fallthru
          _
        // Predicated region
        $region17: #{tpu_custom_call.1} parent=11 // pred_check
          %p287 = pneg %p105
        $region18: #{tpu_custom_call.1} parent=11 // pred_check_branch
          %289 = sbr.rel (%p287) target = $region20
        $region19: #{tpu_custom_call.1} parent=11 // pred_region
          _
        $region20: #{tpu_custom_call.1} parent=11 // pred_fallthru
          _
        // Predicated region
        $region21: #{tpu_custom_call.1} parent=11 // pred_check
          %p290 = pneg %p126
        $region22: #{tpu_custom_call.1} parent=11 // pred_check_branch
          %292 = sbr.rel (%p290) target = $region24
        $region23: #{tpu_custom_call.1} parent=11 // pred_region
          %s294 = ssub.s32 512, 512
          %295 = vsyncadd [#allocation6], %s294
          %s296 = sshll.u32 [#allocation7], 4
          %s297 = int_to_ptr.vmem [resolvable:$true] %s296
          %302 = dma.hbm_to_vmem [thread:$0]  %s3, 512, %s297, [#allocation6], 128, 128, 8
        $region24: #{tpu_custom_call.1} parent=11 // pred_fallthru
          _
        // Predicated region
        $region25: #{tpu_custom_call.1} parent=11 // pred_check
          %p303 = pneg %p147
        $region26: #{tpu_custom_call.1} parent=11 // pred_check_branch
          %305 = sbr.rel (%p303) target = $region28
        $region27: #{tpu_custom_call.1} parent=11 // pred_region
          _
        $region28: #{tpu_custom_call.1} parent=11 // pred_fallthru
          _
      $region12: #{tpu_custom_call.1} parent=5 // pred_fallthru
        _
      %p306 = scmp.lt.s32.totalorder %s25, 2
      // Predicated region
      $region29: #{tpu_custom_call.1} parent=5 // pred_check
        %p307 = pneg %p306
      $region30: #{tpu_custom_call.1} parent=5 // pred_check_branch
        %309 = sbr.rel (%p307) target = $region32
      $region31: #{tpu_custom_call.1} parent=5 // pred_region
        // Predicated region
        $region33: #{tpu_custom_call.1} parent=31 // pred_check
          %p310 = pneg %p57
        $region34: #{tpu_custom_call.1} parent=31 // pred_check_branch
          %312 = sbr.rel (%p310) target = $region36
        $region35: #{tpu_custom_call.1} parent=31 // pred_region
          %s313 = sand.u32 %s47, 1
          %s314 = scalar_lea.sflag [#allocation3], %s313
          %s315 = sand.u32 %s47, 1
          %s316 = smul.addr %s315, 2
          %s317 = scalar_lea.vmem [#allocation2], %s316
          %s319 = ssub.s32 32, 32
          %320 = vsyncadd %s314, %s319
          %s321 = smul.addr %s32, 32
          %s322 = scalar_lea.hbm %s0, %s321
          %s324 = sshll.u32 %s317, 4
          %s325 = int_to_ptr.vmem [resolvable:$true] %s324
          %327 = dma.hbm_to_vmem [thread:$0]  %s322, 32, %s325, %s314
        $region36: #{tpu_custom_call.1} parent=31 // pred_fallthru
          _
        // Predicated region
        $region37: #{tpu_custom_call.1} parent=31 // pred_check
          %p328 = pneg %p169
        $region38: #{tpu_custom_call.1} parent=31 // pred_check_branch
          %330 = sbr.rel (%p328) target = $region40
        $region39: #{tpu_custom_call.1} parent=31 // pred_region
          %p331 = scmp.lt.s32.totalorder %s32, 1
          %s332 = scalar_select %p331, %s32, 1
          %p333 = scmp.lt.s32.totalorder %s33, 0
          %s334 = scalar_select %p333, %s33, 0
          %s335 = sadd.s32 %s334, %s332
          %s336 = smul.addr %s335, 8
          %s337 = scalar_lea.vmem %s5, %s336
        $region40: #{tpu_custom_call.1} parent=31 // pred_fallthru
          _
        // Predicated region
        $region41: #{tpu_custom_call.1} parent=31 // pred_check
          %p338 = pneg %p197
        $region42: #{tpu_custom_call.1} parent=31 // pred_check_branch
          %340 = sbr.rel (%p338) target = $region44
        $region43: #{tpu_custom_call.1} parent=31 // pred_region
          %s341 = sand.u32 %s187, 1
          %s342 = scalar_lea.sflag [#allocation9], %s341
          %s343 = sand.u32 %s187, 1
          %s344 = smul.addr %s343, 8
          %s345 = scalar_lea.vmem [#allocation8], %s344
          %s347 = ssub.s32 128, 128
          %348 = vsyncadd %s342, %s347
          %s349 = sadd.s32 %s33, %s32
          %s350 = smul.addr %s349, 128
          %s351 = scalar_lea.hbm %s6, %s350
          %s353 = sshll.u32 %s345, 4
          %s354 = int_to_ptr.vmem [resolvable:$true] %s353
          %356 = dma.hbm_to_vmem [thread:$0]  %s351, 128, %s354, %s342
        $region44: #{tpu_custom_call.1} parent=31 // pred_fallthru
          _
      $region32: #{tpu_custom_call.1} parent=5 // pred_fallthru
        _
      %p357 = scmp.le.s32.totalorder 1, %s25
      %p358 = scmp.lt.s32.totalorder %s25, 3
      %p359 = pnand %p357, %p358
      %p360 = pneg %p359
      // Predicated region
      $region45: #{tpu_custom_call.1} parent=5 // pred_check
        _
      $region46: #{tpu_custom_call.1} parent=5 // pred_check_branch
        %362 = sbr.rel (%p359) target = $region48
      $region47: #{tpu_custom_call.1} parent=5 // pred_region
        %s363 = ssub.s32 %s25, 1
        %s364 = sand.u32 %s50, 1
        %s365 = scalar_lea.sflag [#allocation3], %s364
        %s366 = sand.u32 %s50, 1
        %s367 = smul.addr %s366, 2
        %s368 = scalar_lea.vmem [#allocation2], %s367
        // Predicated region
        $region49: #{tpu_custom_call.1} parent=47 // pred_check
          %p369 = pneg %p63
        $region50: #{tpu_custom_call.1} parent=47 // pred_check_branch
          %371 = sbr.rel (%p369) target = $region52
        $region51: #{tpu_custom_call.1} parent=47 // pred_region
          %372 = dma.done %s365, 32
        $region52: #{tpu_custom_call.1} parent=47 // pred_fallthru
          _
        // Predicated region
        $region53: #{tpu_custom_call.1} parent=47 // pred_check
          %p373 = pneg %p84
        $region54: #{tpu_custom_call.1} parent=47 // pred_check_branch
          %375 = sbr.rel (%p373) target = $region56
        $region55: #{tpu_custom_call.1} parent=47 // pred_region
          %376 = dma.done [#allocation6], 1024
        $region56: #{tpu_custom_call.1} parent=47 // pred_fallthru
          _
        // Predicated region
        $region57: #{tpu_custom_call.1} parent=47 // pred_check
          %p377 = pneg %p126
        $region58: #{tpu_custom_call.1} parent=47 // pred_check_branch
          %379 = sbr.rel (%p377) target = $region60
        $region59: #{tpu_custom_call.1} parent=47 // pred_region
          %380 = dma.done [#allocation6], 512
        $region60: #{tpu_custom_call.1} parent=47 // pred_fallthru
          _
        %s381 = sand.u32 %s190, 1
        %s382 = scalar_lea.sflag [#allocation9], %s381
        %s383 = sand.u32 %s190, 1
        %s384 = smul.addr %s383, 8
        %s385 = scalar_lea.vmem [#allocation8], %s384
        // Predicated region
        $region61: #{tpu_custom_call.1} parent=47 // pred_check
          %p386 = pneg %p203
        $region62: #{tpu_custom_call.1} parent=47 // pred_check_branch
          %388 = sbr.rel (%p386) target = $region64
        $region63: #{tpu_custom_call.1} parent=47 // pred_region
          %389 = dma.done %s382, 128
        $region64: #{tpu_custom_call.1} parent=47 // pred_fallthru
          _
        %s390 = sand.u32 %s50, 1
        %s391 = scalar_lea.sflag [#allocation3], %s390
        %s392 = sand.u32 %s50, 1
        %s393 = smul.addr %s392, 2
        %s394 = scalar_lea.vmem [#allocation2], %s393
        %p395 = pneg %p63
        %p396 = pneg %p60
        %p397 = pneg %p84
        %p398 = pneg %p81
        %p399 = pneg %p105
        %p400 = pneg %p102
        %p401 = pneg %p126
        %p402 = pneg %p123
        %p403 = pneg %p147
        %p404 = pneg %p144
        %p405 = scmp.lt.s32.totalorder %s34, 1
        %s406 = scalar_select %p405, %s34, 1
        %p407 = scmp.lt.s32.totalorder %s35, 0
        %s408 = scalar_select %p407, %s35, 0
        %s409 = sadd.s32 %s408, %s406
        %s410 = smul.addr %s409, 8
        %s411 = scalar_lea.vmem %s5, %s410
        %p412 = pneg %p175
        %p413 = pneg %p172
        %s414 = sand.u32 %s190, 1
        %s415 = scalar_lea.sflag [#allocation9], %s414
        %s416 = sand.u32 %s190, 1
        %s417 = smul.addr %s416, 8
        %s418 = scalar_lea.vmem [#allocation8], %s417
        %p419 = pneg %p203
        %p420 = pneg %p200
        %p421 = pneg %p231
        %p422 = pneg %p228
        %s423 = sand.u32 %s218, 1
        %s424 = scalar_lea.sflag [#allocation4], %s423
        %s425 = sand.u32 %s218, 1
        %s426 = smul.addr %s425, 8
        %s427 = scalar_lea.vmem [#allocation10], %s426
        %p428 = pneg %p259
        %p429 = pneg %p256
        %p430 = scmp.lt.s32.totalorder %s34, 1
        %s431 = scalar_select %p430, %s34, 1
        %p432 = scmp.lt.s32.totalorder %s35, 0
        %s433 = scalar_select %p432, %s35, 0
        %s434 = sadd.s32 %s433, %s431
        %s435 = smul.addr %s434, 8
        %s436 = scalar_lea.vmem %s8, %s435
        %p437 = scmp.lt.s32.totalorder %s34, 1
        %s438 = scalar_select %p437, %s34, 1
        %p439 = scmp.lt.s32.totalorder %s35, 0
        %s440 = scalar_select %p439, %s35, 0
        %s441 = sadd.s32 %s440, %s438
        %s442 = smul.addr %s441, 8
        %s443 = scalar_lea.vmem %s5, %s442
        %p444 = scmp.lt.s32.totalorder %s34, 1
        %s445 = scalar_select %p444, %s34, 1
        %p446 = scmp.lt.s32.totalorder %s35, 0
        %s447 = scalar_select %p446, %s35, 0
        %s448 = sadd.s32 %s447, %s445
        %s449 = smul.addr %s448, 8
        %s450 = scalar_lea.vmem %s8, %s449
        %v451 = vld [vmem:[%s368] sm:$0x3]
        %v452 = vld [vmem:[%s2] sm:$0x1]
        %v453 = vld [vmem:[#allocation7] sm:$0xff]
        %v454 = vld [vmem:[#allocation7 + $0x8] sm:$0xff]
        %v455 = vld [vmem:[#allocation7 + $0x10] sm:$0xff]
        %v456 = vld [vmem:[#allocation7 + $0x18] sm:$0xff]
        %v457 = vld [vmem:[%s4] sm:$0x1]
        %v458 = vld [vmem:[%s443] sm:$0xff]
        %v459 = vld [vmem:[%s385] sm:$0xff]
        %v460 = vld [vmem:[#allocation5] sm:$0xff]
        %v461 = vld [vmem:[#allocation5 + $0x8] sm:$0xff]
        %v462 = vld [vmem:[#allocation5 + $0x10] sm:$0xff]
        %v463 = vld [vmem:[#allocation5 + $0x18] sm:$0xff]
        %v464 = vlaneseq
        %v465 = vshrl.u32 %v464, 7
        %v466 = vsub.s32 0, %v465
        %v467 = vrot.slane %v451, %v466
        %vm468 = vcmask 261120
        %v470 = vsel %vm468, %v458, 0
        %472 = vmatprep.subr.mxu0 0.0
        %473 = vmatpush1.msra.mxu0 %v460
        %474 = vmatprep.subr.mxu0 0.0
        %475 = vmatpush1.msra.mxu0 %v461
        %476 = vmatprep.subr.mxu0 0.0
        %477 = vmatpush1.msra.mxu0 %v462
        %478 = vmatprep.subr.mxu0 0.0
        %479 = vmatpush1.msra.mxu0 %v463
        %480 = vmatprep.subr.mxu0 0.0
        %481 = vmatpush1.msra.mxu0 0.0
        %482 = vmatprep.subr.mxu0 0.0
        %483 = vmatpush1.msra.mxu0 0.0
        %484 = vmatprep.subr.mxu0 0.0
        %485 = vmatpush1.msra.mxu0 0.0
        %486 = vmatprep.subr.mxu0 0.0
        %487 = vmatpush1.msra.mxu0 0.0
        %488 = vmatprep.subr.mxu0 0.0
        %489 = vmatpush1.msra.mxu0 0.0
        %490 = vmatprep.subr.mxu0 0.0
        %491 = vmatpush1.msra.mxu0 0.0
        %492 = vmatprep.subr.mxu0 0.0
        %493 = vmatpush1.msra.mxu0 0.0
        %494 = vmatprep.subr.mxu0 0.0
        %495 = vmatpush1.msra.mxu0 0.0
        %496 = vmatprep.subr.mxu0 0.0
        %497 = vmatpush1.msra.mxu0 0.0
        %498 = vmatprep.subr.mxu0 0.0
        %499 = vmatpush1.msra.mxu0 0.0
        %500 = vmatprep.subr.mxu0 0.0
        %501 = vmatpush1.msra.mxu0 0.0
        %502 = vmatprep.subr.mxu0 0.0
        %503 = vmatpush1.msra.mxu0 0.0
        %504 = vmatprep.subr.mxu0 0.0
        %505 = vmatpush1.msra.mxu0 0.0
        %506 = vmatprep.subr.mxu0 0.0
        %507 = vmatpush1.msra.mxu0 0.0
        %508 = vmatprep.subr.mxu0 0.0
        %509 = vmatpush1.msra.mxu0 0.0
        %510 = vmatprep.subr.mxu0 0.0
        %511 = vmatpush1.msra.mxu0 0.0
        %512 = vmatprep.subr.mxu0 0.0
        %513 = vmatpush1.msra.mxu0 0.0
        %514 = vmatprep.subr.mxu0 0.0
        %515 = vmatpush1.msra.mxu0 0.0
        %516 = vmatprep.subr.mxu0 0.0
        %517 = vmatpush1.msra.mxu0 0.0
        %518 = vmatprep.subr.mxu0 0.0
        %519 = vmatpush1.msra.mxu0 0.0
        %520 = vmatprep.subr.mxu0 0.0
        %521 = vmatpush1.msra.mxu0 0.0
        %522 = vmatprep.subr.mxu0 0.0
        %523 = vmatpush1.msra.mxu0 0.0
        %524 = vmatprep.subr.mxu0 0.0
        %525 = vmatpush1.msra.mxu0 0.0
        %526 = vmatprep.subr.mxu0 0.0
        %527 = vmatpush1.msra.mxu0 0.0
        %528 = vmatprep.subr.mxu0 0.0
        %529 = vmatpush1.msra.mxu0 0.0
        %530 = vmatprep.subr.mxu0 0.0
        %531 = vmatpush1.msra.mxu0 0.0
        %532 = vmatprep.subr.mxu0 0.0
        %533 = vmatpush1.msra.mxu0 0.0
        %534 = vmatprep.subr.mxu0 0.0
        %535 = vmatpush1.msra.mxu0 0.0
        %536 = vmatprep.mubr.f32.mxu0 0.0
        %537 = vmatmul.mubr.f32.gmra.mrb[0].mxu0 %v470
        %v538 = vpop.f32.mrb[0].mxu0
        %v539 = vadd.f32 %v467, %v538
        %v540 = vpop.f32.mrb[0].mxu0
        %541 = vdwg.mxu0
        %v542 = vtanh.pop %v539
        %v544 = vlaneseq
        %v545 = vshrl.u32 %v544, 7
        %v546 = vsub.s32 0, %v545
        %v547 = vrot.slane %v452, %v546
        %v549 = vmul.f32 %v542, %v547
        %v550 = vsel %vm468, %v549, 0.0
        %551 = vadd.xlane.f32.xlu0 %v550
        %v552 = vpop.xlane.xlu0 %551
        %s553 = scalar_lea.vmem [#allocation5], 32
        %v554 = vld [vmem:[%s553] sm:$0xff]
        %v555 = vld [vmem:[%s553 + $0x8] sm:$0xff]
        %v556 = vld [vmem:[%s553 + $0x10] sm:$0xff]
        %v557 = vld [vmem:[%s553 + $0x18] sm:$0xff]
        %v558 = vlaneseq
        %v559 = vshrl.u32 %v558, 7
        %v560 = vsub.s32 1, %v559
        %v561 = vrot.slane %v451, %v560
        %v563 = vsel %vm468, %v459, 0
        %565 = vmatprep.subr.mxu0 0.0
        %566 = vmatpush1.msra.mxu0 %v554
        %567 = vmatprep.subr.mxu0 0.0
        %568 = vmatpush1.msra.mxu0 %v555
        %569 = vmatprep.subr.mxu0 0.0
        %570 = vmatpush1.msra.mxu0 %v556
        %571 = vmatprep.subr.mxu0 0.0
        %572 = vmatpush1.msra.mxu0 %v557
        %573 = vmatprep.subr.mxu0 0.0
        %574 = vmatpush1.msra.mxu0 0.0
        %575 = vmatprep.subr.mxu0 0.0
        %576 = vmatpush1.msra.mxu0 0.0
        %577 = vmatprep.subr.mxu0 0.0
        %578 = vmatpush1.msra.mxu0 0.0
        %579 = vmatprep.subr.mxu0 0.0
        %580 = vmatpush1.msra.mxu0 0.0
        %581 = vmatprep.subr.mxu0 0.0
        %582 = vmatpush1.msra.mxu0 0.0
        %583 = vmatprep.subr.mxu0 0.0
        %584 = vmatpush1.msra.mxu0 0.0
        %585 = vmatprep.subr.mxu0 0.0
        %586 = vmatpush1.msra.mxu0 0.0
        %587 = vmatprep.subr.mxu0 0.0
        %588 = vmatpush1.msra.mxu0 0.0
        %589 = vmatprep.subr.mxu0 0.0
        %590 = vmatpush1.msra.mxu0 0.0
        %591 = vmatprep.subr.mxu0 0.0
        %592 = vmatpush1.msra.mxu0 0.0
        %593 = vmatprep.subr.mxu0 0.0
        %594 = vmatpush1.msra.mxu0 0.0
        %595 = vmatprep.subr.mxu0 0.0
        %596 = vmatpush1.msra.mxu0 0.0
        %597 = vmatprep.subr.mxu0 0.0
        %598 = vmatpush1.msra.mxu0 0.0
        %599 = vmatprep.subr.mxu0 0.0
        %600 = vmatpush1.msra.mxu0 0.0
        %601 = vmatprep.subr.mxu0 0.0
        %602 = vmatpush1.msra.mxu0 0.0
        %603 = vmatprep.subr.mxu0 0.0
        %604 = vmatpush1.msra.mxu0 0.0
        %605 = vmatprep.subr.mxu0 0.0
        %606 = vmatpush1.msra.mxu0 0.0
        %607 = vmatprep.subr.mxu0 0.0
        %608 = vmatpush1.msra.mxu0 0.0
        %609 = vmatprep.subr.mxu0 0.0
        %610 = vmatpush1.msra.mxu0 0.0
        %611 = vmatprep.subr.mxu0 0.0
        %612 = vmatpush1.msra.mxu0 0.0
        %613 = vmatprep.subr.mxu0 0.0
        %614 = vmatpush1.msra.mxu0 0.0
        %615 = vmatprep.subr.mxu0 0.0
        %616 = vmatpush1.msra.mxu0 0.0
        %617 = vmatprep.subr.mxu0 0.0
        %618 = vmatpush1.msra.mxu0 0.0
        %619 = vmatprep.subr.mxu0 0.0
        %620 = vmatpush1.msra.mxu0 0.0
        %621 = vmatprep.subr.mxu0 0.0
        %622 = vmatpush1.msra.mxu0 0.0
        %623 = vmatprep.subr.mxu0 0.0
        %624 = vmatpush1.msra.mxu0 0.0
        %625 = vmatprep.subr.mxu0 0.0
        %626 = vmatpush1.msra.mxu0 0.0
        %627 = vmatprep.subr.mxu0 0.0
        %628 = vmatpush1.msra.mxu0 0.0
        %629 = vmatprep.mubr.f32.mxu0 0.0
        %630 = vmatmul.mubr.f32.gmra.mrb[0].mxu0 %v563
        %v631 = vpop.f32.mrb[0].mxu0
        %v632 = vadd.f32 %v561, %v631
        %v633 = vpop.f32.mrb[0].mxu0
        %634 = vdwg.mxu0
        %v635 = vtanh.pop %v632
        %v636 = vmul.f32 %v635, %v547
        %v637 = vsel %vm468, %v636, 0.0
        %638 = vadd.xlane.f32.xlu0 %v637
        %v639 = vpop.xlane.xlu0 %638
        %v640 = vmax.f32 %v552, %v639
        %v641 = vsub.f32 %v552, %v640
        %v642 = vmul.f32 %v641, 1.442695
        %v643 = vpow.pop %v642
        %v644 = vsub.f32 %v639, %v640
        %v645 = vmul.f32 %v644, 1.442695
        %v646 = vpow.pop %v645
        %v647 = vadd.f32 %v643, %v646
        %v648 = vrcp.pop %v647
        %v649 = vmul.f32 %v643, %v648
        %v650 = vmul.f32 %v646, %v648
        %v651 = vmul.f32 %v649, %v458
        %v652 = vmul.f32 %v650, %v459
        %v653 = vadd.f32 %v651, %v652
        %v655 = vlaneseq
        %v656 = vshrl.u32 %v655, 7
        %v657 = vsub.s32 0, %v656
        %v658 = vrot.slane %v457, %v657
        %v661 = vsel %vm468, %v653, 0
        %663 = vmatprep.subr.mxu0 0.0
        %664 = vmatpush1.msra.mxu0 %v453
        %665 = vmatprep.subr.mxu0 0.0
        %666 = vmatpush1.msra.mxu0 %v454
        %667 = vmatprep.subr.mxu0 0.0
        %668 = vmatpush1.msra.mxu0 %v455
        %669 = vmatprep.subr.mxu0 0.0
        %670 = vmatpush1.msra.mxu0 %v456
        %671 = vmatprep.subr.mxu0 0.0
        %672 = vmatpush1.msra.mxu0 0.0
        %673 = vmatprep.subr.mxu0 0.0
        %674 = vmatpush1.msra.mxu0 0.0
        %675 = vmatprep.subr.mxu0 0.0
        %676 = vmatpush1.msra.mxu0 0.0
        %677 = vmatprep.subr.mxu0 0.0
        %678 = vmatpush1.msra.mxu0 0.0
        %679 = vmatprep.subr.mxu0 0.0
        %680 = vmatpush1.msra.mxu0 0.0
        %681 = vmatprep.subr.mxu0 0.0
        %682 = vmatpush1.msra.mxu0 0.0
        %683 = vmatprep.subr.mxu0 0.0
        %684 = vmatpush1.msra.mxu0 0.0
        %685 = vmatprep.subr.mxu0 0.0
        %686 = vmatpush1.msra.mxu0 0.0
        %687 = vmatprep.subr.mxu0 0.0
        %688 = vmatpush1.msra.mxu0 0.0
        %689 = vmatprep.subr.mxu0 0.0
        %690 = vmatpush1.msra.mxu0 0.0
        %691 = vmatprep.subr.mxu0 0.0
        %692 = vmatpush1.msra.mxu0 0.0
        %693 = vmatprep.subr.mxu0 0.0
        %694 = vmatpush1.msra.mxu0 0.0
        %695 = vmatprep.subr.mxu0 0.0
        %696 = vmatpush1.msra.mxu0 0.0
        %697 = vmatprep.subr.mxu0 0.0
        %698 = vmatpush1.msra.mxu0 0.0
        %699 = vmatprep.subr.mxu0 0.0
        %700 = vmatpush1.msra.mxu0 0.0
        %701 = vmatprep.subr.mxu0 0.0
        %702 = vmatpush1.msra.mxu0 0.0
        %703 = vmatprep.subr.mxu0 0.0
        %704 = vmatpush1.msra.mxu0 0.0
        %705 = vmatprep.subr.mxu0 0.0
        %706 = vmatpush1.msra.mxu0 0.0
        %707 = vmatprep.subr.mxu0 0.0
        %708 = vmatpush1.msra.mxu0 0.0
        %709 = vmatprep.subr.mxu0 0.0
        %710 = vmatpush1.msra.mxu0 0.0
        %711 = vmatprep.subr.mxu0 0.0
        %712 = vmatpush1.msra.mxu0 0.0
        %713 = vmatprep.subr.mxu0 0.0
        %714 = vmatpush1.msra.mxu0 0.0
        %715 = vmatprep.subr.mxu0 0.0
        %716 = vmatpush1.msra.mxu0 0.0
        %717 = vmatprep.subr.mxu0 0.0
        %718 = vmatpush1.msra.mxu0 0.0
        %719 = vmatprep.subr.mxu0 0.0
        %720 = vmatpush1.msra.mxu0 0.0
        %721 = vmatprep.subr.mxu0 0.0
        %722 = vmatpush1.msra.mxu0 0.0
        %723 = vmatprep.subr.mxu0 0.0
        %724 = vmatpush1.msra.mxu0 0.0
        %725 = vmatprep.subr.mxu0 0.0
        %726 = vmatpush1.msra.mxu0 0.0
        %727 = vmatprep.mubr.f32.mxu0 0.0
        %728 = vmatmul.mubr.f32.gmra.mrb[0].mxu0 %v661
        %v729 = vpop.f32.mrb[0].mxu0
        %v730 = vadd.f32 %v658, %v729
        %v731 = vpop.f32.mrb[0].mxu0
        %732 = vdwg.mxu0
        %v733 = vtanh.pop %v730
        %734 = vst.msk [vmem:[%s427] sm:$0xff] %vm468, %v733
        %vm735 = vcmask 7168
        %v736 = vsel %vm735, %v649, %v650
        %vm737 = vcmask 15360
        %738 = vst.msk [vmem:[%s450] sm:$0xff] %vm737, %v736
        %s739 = sand.u32 %s218, 1
        %s740 = scalar_lea.sflag [#allocation4], %s739
        %s741 = sand.u32 %s218, 1
        %s742 = smul.addr %s741, 8
        %s743 = scalar_lea.vmem [#allocation10], %s742
        %p744 = scmp.lt.s32.totalorder %s34, 1
        %s745 = scalar_select %p744, %s34, 1
        %p746 = scmp.lt.s32.totalorder %s35, 0
        %s747 = scalar_select %p746, %s35, 0
        %s748 = sadd.s32 %s747, %s745
        %s749 = smul.addr %s748, 8
        %s750 = scalar_lea.vmem %s8, %s749
        // Predicated region
        $region65: #{tpu_custom_call.1} parent=47 // pred_check
          %p751 = pneg %p228
        $region66: #{tpu_custom_call.1} parent=47 // pred_check_branch
          %753 = sbr.rel (%p751) target = $region68
        $region67: #{tpu_custom_call.1} parent=47 // pred_region
          %s755 = ssub.s32 128, 128
          %756 = vsyncadd %s740, %s755
          %s757 = sadd.s32 %s35, %s34
          %s758 = smul.addr %s757, 128
          %s759 = scalar_lea.hbm %s7, %s758
          %s761 = sshll.u32 %s743, 4
          %s762 = int_to_ptr.vmem [resolvable:$true] %s761
          %764 = dma.vmem_to_hbm [thread:$0]  %s762, 128, %s759, %s740
        $region68: #{tpu_custom_call.1} parent=47 // pred_fallthru
          _
        // Predicated region
        $region69: #{tpu_custom_call.1} parent=47 // pred_check
          %p765 = pneg %p256
        $region70: #{tpu_custom_call.1} parent=47 // pred_check_branch
          %767 = sbr.rel (%p765) target = $region72
        $region71: #{tpu_custom_call.1} parent=47 // pred_region
          _
        $region72: #{tpu_custom_call.1} parent=47 // pred_fallthru
          _
      $region48: #{tpu_custom_call.1} parent=5 // pred_fallthru
        _
      %p768 = scmp.le.s32.totalorder 2, %s25
      // Predicated region
      $region73: #{tpu_custom_call.1} parent=5 // pred_check
        %p769 = pneg %p768
      $region74: #{tpu_custom_call.1} parent=5 // pred_check_branch
        %771 = sbr.rel (%p769) target = $region76
      $region75: #{tpu_custom_call.1} parent=5 // pred_region
        %s772 = ssub.s32 %s25, 2
        // Predicated region
        $region77: #{tpu_custom_call.1} parent=75 // pred_check
          %p773 = pneg %p234
        $region78: #{tpu_custom_call.1} parent=75 // pred_check_branch
          %775 = sbr.rel (%p773) target = $region80
        $region79: #{tpu_custom_call.1} parent=75 // pred_region
          %s776 = sand.u32 %s219, 1
          %s777 = scalar_lea.sflag [#allocation4], %s776
          %s778 = sand.u32 %s219, 1
          %s779 = smul.addr %s778, 8
          %s780 = scalar_lea.vmem [#allocation10], %s779
          %781 = dma.done %s777, 128
        $region80: #{tpu_custom_call.1} parent=75 // pred_fallthru
          _
        // Predicated region
        $region81: #{tpu_custom_call.1} parent=75 // pred_check
          %p782 = pneg %p262
        $region82: #{tpu_custom_call.1} parent=75 // pred_check_branch
          %784 = sbr.rel (%p782) target = $region84
        $region83: #{tpu_custom_call.1} parent=75 // pred_region
          %p785 = scmp.lt.s32.totalorder %s36, 1
          %s786 = scalar_select %p785, %s36, 1
          %p787 = scmp.lt.s32.totalorder %s37, 0
          %s788 = scalar_select %p787, %s37, 0
          %s789 = sadd.s32 %s788, %s786
          %s790 = smul.addr %s789, 8
          %s791 = scalar_lea.vmem %s8, %s790
        $region84: #{tpu_custom_call.1} parent=75 // pred_fallthru
          _
      $region76: #{tpu_custom_call.1} parent=5 // pred_fallthru
        _
    $region6: #{tpu_custom_call.1} parent=1 // loop_footer
      %s29 = sadd.s32 1, %s25
    $region7: #{tpu_custom_call.1} parent=1 // loop_footer_branch
      %24 = sbr.rel target = $region3
    $region8: #{tpu_custom_call.1} parent=1 // loop_exit
      _
    %792 = vsyncpa [#allocation3], 1
    %s793 = scalar_lea.sflag [#allocation3], 1
    %794 = vsyncpa %s793, 1
    %795 = vsyncpa [#allocation6], 1
    %796 = vsyncpa [#allocation9], 1
    %s797 = scalar_lea.sflag [#allocation9], 1
    %798 = vsyncpa %s797, 1
    %799 = vsyncpa [#allocation4], 1
    %s800 = scalar_lea.sflag [#allocation4], 1
    %801 = vsyncpa %s800, 1

</llo_original>
